<compile_context>
chip_gen: v7x
topology: tpu7x:2x2x1
jax: 0.10.0
libtpu: 0.0.40
codegen_flags: <defaults>
</compile_context>

<pallas_src>
import math

import numpy as np

import jax
import jax.numpy as jnp
from jax.experimental import pallas as pl
from jax.experimental.pallas import tpu as pltpu


def _cdiv(a, b):
    return -(-a // b)


def _make_kernel(H, W):
    HW = H * W

    def shift_left(a, k):
        # out[:, p] = a[:, p + k] for p < HW - k (wrapped tail lanes are never
        # consumed downstream).  Explicit slice+concat == jnp.roll(a, -k, 1).
        return jnp.concatenate([a[:, k:], a[:, :k]], axis=1)

    def kernel(c_ref, e_ref, pen_ref, lb_ref, x_ref, o_ref):
        """One batch tile per grid step (batch on sublanes, pixels on lanes).

        c_ref : (HW, HW) conv-as-matmul matrix                   (VMEM)
        e_ref : (HW, Hp) lane-compaction + linear-weight matrix  (VMEM)
        pen_ref: (2, HW) ceil_mode penalties (0 / -1e30)         (VMEM)
        lb_ref: (1,)     fused bias  lin_b + conv_b*(lw0+lw1)    (SMEM)
        x_ref : (TN, HW) input tile, natural layout              (VMEM)
        o_ref : (TN, Hp) output tile                             (VMEM)
        """
        x = x_ref[...]                                            # (TN, HW) f32

        # Conv2d(1->1, 3x3, valid) as a single MXU matmul; output stays in the
        # flattened H*W lane space, invalid positions are exactly 0.
        conv = jnp.dot(x, c_ref[...], preferred_element_type=jnp.float32)

        # MaxPool2d(kernel=2, stride=2, ceil_mode=True):
        #   vertical pairwise max (partner = one conv row below, +W lanes),
        #   then horizontal pairwise max (partner = one conv col right, +1).
        # pen rows are 0 where the partner exists and -1e30 where ceil_mode
        # clips the window, keeping everything finite (no NaN/Inf in the
        # following matmul).
        conv_dn = shift_left(conv, W)
        pv = jnp.maximum(conv, conv_dn + pen_ref[0:1, :])
        pv_rt = shift_left(pv, 1)
        ph = jnp.maximum(pv, pv_rt + pen_ref[1:2, :])

        # Lane compaction + Linear(in=2, out=1) as one tiny matmul, then the
        # fused bias and ReLU on the (TN, Hp) result.
        y = jnp.dot(ph, e_ref[...], preferred_element_type=jnp.float32)
        o_ref[...] = jnp.maximum(y + lb_ref[0], 0.0)

    return kernel


def net_forward(x, conv_w, conv_b, lin_w, lin_b, *, tn=4096):
    """x: (N, 1, H, W) float32. Returns (N, 1, Hp, 1) float32."""
    N, C, H, W = x.shape
    if C != 1:
        raise ValueError("Net expects a single input channel")
    Hc, Wc = H - 2, W - 2
    if Hc < 1 or Wc < 1:
        raise ValueError("spatial dims too small for a 3x3 valid conv")
    Hp, Wp = _cdiv(Hc, 2), _cdiv(Wc, 2)
    if Wp != 2:
        raise ValueError(
            "Linear(in_features=2) requires pooled width == 2 (input W in {5, 6})")
    HW = H * W

    w_flat = conv_w.reshape(-1).astype(jnp.float32)              # (9,)
    lw = lin_w.reshape(-1).astype(jnp.float32)                   # (2,)
    # Fold the conv bias through the max-pool into the linear bias:
    #   max(a + cb) = max(a) + cb  =>  y = q0*lw0 + q1*lw1 + (lb + cb*(lw0+lw1))
    lb = (lin_b.reshape(-1)[:1]
          + conv_b.reshape(-1)[0] * (lw[0] + lw[1])).astype(jnp.float32)

    # --- Conv-as-matmul matrix C: conv_flat = x_flat @ C --------------------
    rows, cols, widx = [], [], []
    for i in range(Hc):
        for j in range(Wc):
            p = i * W + j
            for di in range(3):
                for dj in range(3):
                    rows.append((i + di) * W + (j + dj))
                    cols.append(p)
                    widx.append(3 * di + dj)
    cmat = jnp.zeros((HW, HW), jnp.float32).at[
        np.asarray(rows), np.asarray(cols)].set(w_flat[np.asarray(widx)])

    # --- Lane-compaction + linear matrix E: out = ph @ E --------------------
    e_rows = np.asarray([2 * po * W for po in range(Hp)]
                        + [2 * po * W + 2 for po in range(Hp)])
    e_cols = np.asarray(list(range(Hp)) * 2)
    e_vals = jnp.concatenate([jnp.broadcast_to(lw[0], (Hp,)),
                              jnp.broadcast_to(lw[1], (Hp,))])
    emat = jnp.zeros((HW, Hp), jnp.float32).at[e_rows, e_cols].set(e_vals)

    # --- ceil_mode penalties (0 where the pooling partner exists) -----------
    pidx = np.arange(HW)
    pen = jnp.asarray(np.stack([
        np.where(pidx // W + 1 < Hc, 0.0, -1e30),     # vertical partner
        np.where(pidx % W + 1 < Wc, 0.0, -1e30),      # horizontal partner
    ]).astype(np.float32))                                        # (2, HW)

    x2d = x.reshape(N, HW).astype(jnp.float32)        # free reshape, no copy

    # Batch tile: multiple of 8 (sublane rule), capped by the batch; for large
    # batches keep at least 2 grid steps so v7x's two TensorCores both work.
    tn = max(8, (int(tn) // 8) * 8)
    tn = min(tn, _cdiv(N, 8) * 8)
    if N >= 2048:
        tn = min(tn, _cdiv(_cdiv(N, 2), 8) * 8)
    grid = (pl.cdiv(N, tn),)

    out = pl.pallas_call(
        _make_kernel(H, W),
        out_shape=jax.ShapeDtypeStruct((N, Hp), jnp.float32),
        grid=grid,
        in_specs=[
            pl.BlockSpec((HW, HW), lambda n: (0, 0)),            # conv matrix
            pl.BlockSpec((HW, Hp), lambda n: (0, 0)),            # extraction
            pl.BlockSpec((2, HW), lambda n: (0, 0)),             # penalties
            pl.BlockSpec(memory_space=pltpu.MemorySpace.SMEM),   # fused bias
            pl.BlockSpec((tn, HW), lambda n: (n, 0)),            # x tile
        ],
        out_specs=pl.BlockSpec((tn, Hp), lambda n: (n, 0)),
        compiler_params=pltpu.CompilerParams(
            dimension_semantics=("parallel",),                   # megacore on v7x
            vmem_limit_bytes=64 * 1024 * 1024),                  # v5e default is 16 MiB
        cost_estimate=pl.CostEstimate(
            flops=2 * N * HW * (HW + Hp) + 6 * N * HW,
            transcendentals=0,
            bytes_accessed=N * HW * 4 + N * Hp * 4 + HW * (HW + Hp + 2) * 4),
    )(cmat, emat, pen, lb, x2d)

    return out.reshape(N, 1, Hp, 1)


def ref_forward(x, conv_w, conv_b, lin_w, lin_b):
    """Exact-f32 pure-JAX reference (elementwise only, no MXU) of the forward."""
    N, _, H, W = x.shape
    Hc, Wc = H - 2, W - 2
    Hp, Wp = _cdiv(Hc, 2), _cdiv(Wc, 2)
    xs = x[:, 0].astype(jnp.float32)
    w = conv_w.reshape(3, 3).astype(jnp.float32)
    conv = jnp.zeros((N, Hc, Wc), jnp.float32)
    for di in range(3):
        for dj in range(3):
            conv = conv + w[di, dj] * xs[:, di:di + Hc, dj:dj + Wc]
    conv = conv + conv_b.reshape(-1)[0]
    rows = []
    for i in range(Hp):
        cols = []
        for j in range(Wp):
            blk = conv[:, 2 * i:min(2 * i + 2, Hc), 2 * j:min(2 * j + 2, Wc)]
            cols.append(jnp.max(blk, axis=(1, 2)))
        rows.append(jnp.stack(cols, axis=-1))
    pooled = jnp.stack(rows, axis=1)                              # (N, Hp, 2)
    lw = lin_w.reshape(-1).astype(jnp.float32)
    y = pooled[..., 0] * lw[0] + pooled[..., 1] * lw[1] + lin_b.reshape(-1)[0]
    return jnp.maximum(y, 0.0).reshape(N, 1, Hp, 1)


if __name__ == "__main__":
    key = jax.random.PRNGKey(0)
    kx, kcw, kcb, klw, klb = jax.random.split(key, 5)

    # Small input consistent with the module: (N=2, C=1, H=16, W=6)
    x = jax.random.normal(kx, (2, 1, 16, 6), dtype=jnp.float32)

    # Deterministic parameter init (shapes from the PyTorch module's __init__)
    conv_w = jax.random.uniform(kcw, (3, 3), jnp.float32, -1.0 / 3, 1.0 / 3)
    conv_b = jax.random.uniform(kcb, (1,), jnp.float32, -1.0 / 3, 1.0 / 3)
    lin_w = jax.random.uniform(klw, (1, 2), jnp.float32,
                               -1.0 / math.sqrt(2), 1.0 / math.sqrt(2))
    lin_b = jax.random.uniform(klb, (1,), jnp.float32,
                               -1.0 / math.sqrt(2), 1.0 / math.sqrt(2))

    fwd = jax.jit(net_forward, static_argnames=("tn",))

    out = jax.block_until_ready(fwd(x, conv_w, conv_b, lin_w, lin_b))
    ref = ref_forward(x, conv_w, conv_b, lin_w, lin_b)
    assert out.shape == ref.shape == (2, 1, 7, 1), (out.shape, ref.shape)
    assert jnp.allclose(out, ref, atol=1e-4, rtol=1e-4), (
        float(jnp.max(jnp.abs(out - ref))))

    # Larger batch: multi-step grid + a partial final block (300 % 128 != 0).
    x2 = jax.random.normal(jax.random.PRNGKey(1), (300, 1, 16, 6),
                           dtype=jnp.float32)
    out2 = jax.block_until_ready(fwd(x2, conv_w, conv_b, lin_w, lin_b, tn=128))
    ref2 = ref_forward(x2, conv_w, conv_b, lin_w, lin_b)
    assert out2.shape == ref2.shape == (300, 1, 7, 1)
    assert jnp.allclose(out2, ref2, atol=1e-4, rtol=1e-4), (
        float(jnp.max(jnp.abs(out2 - ref2))))

    print("KERNEL_OK")
</pallas_src>

<mosaic_0001>
module attributes {stable_mosaic.version = 11 : i64} {
  func.func @kernel(%arg0: i32, %arg1: memref<96x96xf32, #tpu.memory_space<vmem>>, %arg2: memref<96x7xf32, #tpu.memory_space<vmem>>, %arg3: memref<2x96xf32, #tpu.memory_space<vmem>>, %arg4: memref<1xf32, #tpu.memory_space<smem>>, %arg5: memref<8x96xf32, #tpu.memory_space<vmem>>, %arg6: memref<8x7xf32, #tpu.memory_space<vmem>>) attributes {dimension_semantics = [#tpu.dimension_semantics<parallel>], iteration_bounds = array<i64: 1>, scalar_prefetch = 0 : i64, scratch_operands = 0 : i64, tpu.core_type = #tpu.core_type<tc>, window_params = [{pipeline_mode = #tpu.pipeline_mode<synchronous>, transform_indices = @transform_0, window_bounds = array<i64: 96, 96>}, {pipeline_mode = #tpu.pipeline_mode<synchronous>, transform_indices = @transform_1, window_bounds = array<i64: 96, 7>}, {pipeline_mode = #tpu.pipeline_mode<synchronous>, transform_indices = @transform_2, window_bounds = array<i64: 2, 96>}, {transform_indices = @transform_3, window_bounds = array<i64: 1>}, {transform_indices = @transform_4, window_bounds = array<i64: 8, 96>}, {transform_indices = @transform_5, window_bounds = array<i64: 8, 7>}]} {
    %c0 = arith.constant 0 : index
    %c0_0 = arith.constant 0 : index
    %0 = vector.load %arg5[%c0, %c0_0] : memref<8x96xf32, #tpu.memory_space<vmem>>, vector<8x96xf32>
    %c0_1 = arith.constant 0 : index
    %c0_2 = arith.constant 0 : index
    %1 = vector.load %arg1[%c0_1, %c0_2] : memref<96x96xf32, #tpu.memory_space<vmem>>, vector<96x96xf32>
    %cst = arith.constant dense<0.000000e+00> : vector<8x96xf32>
    %2 = tpu.matmul %0, %1, %cst {dimension_numbers = #tpu.dot_dimension_numbers<[1], [0], [0], [1], [0, 0, 1, 1], [], []>} : vector<8x96xf32>, vector<96x96xf32>, vector<8x96xf32> -> vector<8x96xf32>
    %3 = vector.extract_strided_slice %2 {offsets = [0, 6], sizes = [8, 90], strides = [1, 1]} : vector<8x96xf32> to vector<8x90xf32>
    %4 = vector.extract_strided_slice %2 {offsets = [0, 0], sizes = [8, 6], strides = [1, 1]} : vector<8x96xf32> to vector<8x6xf32>
    %5 = tpu.concatenate %3, %4 in 1 : vector<8x90xf32>, vector<8x6xf32> -> vector<8x96xf32>
    %c0_3 = arith.constant 0 : index
    %c0_4 = arith.constant 0 : index
    %6 = vector.load %arg3[%c0_3, %c0_4] : memref<2x96xf32, #tpu.memory_space<vmem>>, vector<1x96xf32>
    %7 = vector.broadcast %6 : vector<1x96xf32> to vector<8x96xf32>
    %8 = arith.addf %5, %7 : vector<8x96xf32>
    %9 = arith.maximumf %2, %8 : vector<8x96xf32>
    %10 = vector.extract_strided_slice %9 {offsets = [0, 1], sizes = [8, 95], strides = [1, 1]} : vector<8x96xf32> to vector<8x95xf32>
    %11 = vector.extract_strided_slice %9 {offsets = [0, 0], sizes = [8, 1], strides = [1, 1]} : vector<8x96xf32> to vector<8x1xf32>
    %12 = tpu.concatenate %10, %11 in 1 : vector<8x95xf32>, vector<8x1xf32> -> vector<8x96xf32>
    %c1 = arith.constant 1 : index
    %c0_5 = arith.constant 0 : index
    %13 = vector.load %arg3[%c1, %c0_5] : memref<2x96xf32, #tpu.memory_space<vmem>>, vector<1x96xf32>
    %14 = vector.broadcast %13 : vector<1x96xf32> to vector<8x96xf32>
    %15 = arith.addf %12, %14 : vector<8x96xf32>
    %16 = arith.maximumf %9, %15 : vector<8x96xf32>
    %c0_6 = arith.constant 0 : index
    %c0_7 = arith.constant 0 : index
    %17 = vector.load %arg2[%c0_6, %c0_7] : memref<96x7xf32, #tpu.memory_space<vmem>>, vector<96x7xf32>
    %cst_8 = arith.constant dense<0.000000e+00> : vector<8x7xf32>
    %18 = tpu.matmul %16, %17, %cst_8 {dimension_numbers = #tpu.dot_dimension_numbers<[1], [0], [0], [1], [0, 0, 1, 1], [], []>} : vector<8x96xf32>, vector<96x7xf32>, vector<8x7xf32> -> vector<8x7xf32>
    %c0_9 = arith.constant 0 : index
    %19 = memref.load %arg4[%c0_9] : memref<1xf32, #tpu.memory_space<smem>>
    %20 = vector.broadcast %19 : f32 to vector<8x7xf32>
    %21 = arith.addf %18, %20 : vector<8x7xf32>
    %cst_10 = arith.constant 0.000000e+00 : f32
    %22 = vector.broadcast %cst_10 : f32 to vector<8x7xf32>
    %23 = arith.maximumf %21, %22 : vector<8x7xf32>
    %c0_11 = arith.constant 0 : index
    %c0_12 = arith.constant 0 : index
    %24 = vector.load %arg6[%c0_11, %c0_12] : memref<8x7xf32, #tpu.memory_space<vmem>>, vector<8x7xf32>
    tpu.vector_store %arg6[%c0_11, %c0_12], %23 {strides = array<i32>} : memref<8x7xf32, #tpu.memory_space<vmem>>, vector<8x7xf32>,
    return
  }
  func.func @transform_0(%arg0: i32) -> (i32, i32) {
    %c0_i32 = arith.constant 0 : i32
    %c0_i32_0 = arith.constant 0 : i32
    %c0_i32_1 = arith.constant 0 : i32
    return %c0_i32, %c0_i32_0 : i32, i32
  }
  func.func @transform_1(%arg0: i32) -> (i32, i32) {
    %c0_i32 = arith.constant 0 : i32
    %c0_i32_0 = arith.constant 0 : i32
    %c0_i32_1 = arith.constant 0 : i32
    return %c0_i32, %c0_i32_0 : i32, i32
  }
  func.func @transform_2(%arg0: i32) -> (i32, i32) {
    %c0_i32 = arith.constant 0 : i32
    %c0_i32_0 = arith.constant 0 : i32
    %c0_i32_1 = arith.constant 0 : i32
    return %c0_i32, %c0_i32_0 : i32, i32
  }
  func.func @transform_3(%arg0: i32) -> i32 {
    %c0_i32 = arith.constant 0 : i32
    %c0_i32_0 = arith.constant 0 : i32
    return %c0_i32 : i32
  }
  func.func @transform_4(%arg0: i32) -> (i32, i32) {
    %c0_i32 = arith.constant 0 : i32
    %c0_i32_0 = arith.constant 0 : i32
    return %arg0, %c0_i32 : i32, i32
  }
  func.func @transform_5(%arg0: i32) -> (i32, i32) {
    %c0_i32 = arith.constant 0 : i32
    %c0_i32_0 = arith.constant 0 : i32
    return %arg0, %c0_i32 : i32, i32
  }
}

</mosaic_0001>

<llo_original>
// kernel: net_forward.1
$region0: #{net_forward.1}
  #allocation0 [shape = 'u32[]', space=smem, size = 0x4, offset = 0x4, fixed_abs, tag = 'smem constant byte address 0x4 - core index']
  #allocation1 [shape = 'u32[144,128]{1,0:T(1,128)}', space=vmem, size = 0x12000, scoped, tag = 'internal scratch']
  #allocation2 [shape = 'f32[1]{0:T(128)S(6)}', space=smem, size = 0x200, scoped, tag = 'scoped memory for net_forward.1']
  %s0 = inlined_call_operand.hbm [shape: f32[96,96], index: 0, kind: input, shape index: {}]
  %s1 = inlined_call_operand.hbm [shape: f32[96,7], index: 1, kind: input, shape index: {}]
  %s2 = inlined_call_operand.hbm [shape: f32[2,96], index: 2, kind: input, shape index: {}]
  %s3 = inlined_call_operand.<no memory space> [shape: f32[1], index: 3, kind: input, shape index: {}]
  %s4 = inlined_call_operand.hbm [shape: f32[2,96], index: 4, kind: input, shape index: {}]
  %s5 = inlined_call_operand.hbm [shape: f32[2,7], index: 5, kind: output, shape index: {}]
  %s6 = sld [smem:[#allocation0]]
  $region46: #{net_forward.1} parent=0
    _
  %s8 = ssub.s32 1, %s6
  %s9 = scalar_select 0, %s8, %s6
  %10 = sst [smem:[#allocation2]] %s3
  $region1: #{net_forward.1} parent=0
    #allocation3 [shape = 'u8[49152]{0}', space=vmem, size = 0xc000, scoped, tag = 'input window, operand 0, single buffered']
    #allocation4 [shape = 's32[1]{0}', space=sflag, size = 0x4, scoped, tag = 'scoped memory for net_forward.1']
    #allocation5 [shape = 's32[1]{0}', space=sflag, size = 0x4, scoped, tag = 'scoped memory for net_forward.1']
    #allocation6 [shape = 'u8[49152]{0}', space=vmem, size = 0xc000, scoped, tag = 'input window, operand 1, single buffered']
    #allocation7 [shape = 's32[1]{0}', space=sflag, size = 0x4, scoped, tag = 'scoped memory for net_forward.1']
    #allocation8 [shape = 'u8[1024]{0}', space=vmem, size = 0x400, scoped, tag = 'input window, operand 2, single buffered']
    #allocation9 [shape = 'u8[4096]{0}', space=vmem, size = 0x1000, scoped, tag = 'input window, operand 4, single buffered']
    #allocation10 [shape = 's32[1]{0}', space=sflag, size = 0x4, scoped, tag = 'scoped memory for net_forward.1']
    #allocation11 [shape = 'u8[4096]{0}', space=vmem, size = 0x1000, scoped, tag = 'output window, operand 0, single buffered']
    %11 = vsyncpa [#allocation4], 0
    %12 = vsyncpa [#allocation7], 0
    %13 = vsyncpa [#allocation10], 0
    %14 = vsyncpa [#allocation5], 0
    // Predicated region
    $region2: #{net_forward.1} parent=1 // pred_check
      _
    $region3: #{net_forward.1} parent=1 // pred_check_branch
      %16 = sbr.rel (0) target = $region5
    $region4: #{net_forward.1} parent=1 // pred_region
      %s18 = ssub.s32 1536, 1536
      %19 = vsyncadd [#allocation4], %s18
      %s20 = sshll.u32 [#allocation3], 4
      %s21 = int_to_ptr.vmem [resolvable:$true] %s20
      %26 = dma.hbm_to_vmem [thread:$0]  %s0, 1536, %s21, [#allocation4], 128, 128, 8
    $region5: #{net_forward.1} parent=1 // pred_fallthru
      _
    // Predicated region
    $region6: #{net_forward.1} parent=1 // pred_check
      _
    $region7: #{net_forward.1} parent=1 // pred_check_branch
      %28 = sbr.rel (0) target = $region9
    $region8: #{net_forward.1} parent=1 // pred_region
      %s30 = ssub.s32 1536, 1536
      %31 = vsyncadd [#allocation7], %s30
      %s32 = sshll.u32 [#allocation6], 4
      %s33 = int_to_ptr.vmem [resolvable:$true] %s32
      %38 = dma.hbm_to_vmem [thread:$0]  %s1, 1536, %s33, [#allocation7], 128, 128, 8
    $region9: #{net_forward.1} parent=1 // pred_fallthru
      _
    // Predicated region
    $region10: #{net_forward.1} parent=1 // pred_check
      _
    $region11: #{net_forward.1} parent=1 // pred_check_branch
      %40 = sbr.rel (0) target = $region13
    $region12: #{net_forward.1} parent=1 // pred_region
      %s42 = ssub.s32 32, 32
      %43 = vsyncadd [#allocation7], %s42
      %s45 = sshll.u32 [#allocation8], 4
      %s46 = int_to_ptr.vmem [resolvable:$true] %s45
      %48 = dma.hbm_to_vmem [thread:$0]  %s2, 32, %s46, [#allocation7]
    $region13: #{net_forward.1} parent=1 // pred_fallthru
      _
    // Predicated region
    $region14: #{net_forward.1} parent=1 // pred_check
      _
    $region15: #{net_forward.1} parent=1 // pred_check_branch
      %50 = sbr.rel (0) target = $region17
    $region16: #{net_forward.1} parent=1 // pred_region
      _
    $region17: #{net_forward.1} parent=1 // pred_fallthru
      _
    // Predicated region
    $region18: #{net_forward.1} parent=1 // pred_check
      _
    $region19: #{net_forward.1} parent=1 // pred_check_branch
      %52 = sbr.rel (0) target = $region21
    $region20: #{net_forward.1} parent=1 // pred_region
      %s54 = ssub.s32 128, 32
      %55 = vsyncadd [#allocation10], %s54
      %s56 = sshll.u32 [#allocation9], 4
      %s57 = int_to_ptr.vmem [resolvable:$true] %s56
      %62 = dma.hbm_to_vmem [thread:$0]  %s4, 32, %s57, [#allocation10], 32, 32, 2
    $region21: #{net_forward.1} parent=1 // pred_fallthru
      _
    // Predicated region
    $region22: #{net_forward.1} parent=1 // pred_check
      _
    $region23: #{net_forward.1} parent=1 // pred_check_branch
      %64 = sbr.rel (0) target = $region25
    $region24: #{net_forward.1} parent=1 // pred_region
      %65 = dma.done [#allocation4], 1536
    $region25: #{net_forward.1} parent=1 // pred_fallthru
      _
    // Predicated region
    $region26: #{net_forward.1} parent=1 // pred_check
      _
    $region27: #{net_forward.1} parent=1 // pred_check_branch
      %67 = sbr.rel (0) target = $region29
    $region28: #{net_forward.1} parent=1 // pred_region
      %68 = dma.done [#allocation7], 1536
    $region29: #{net_forward.1} parent=1 // pred_fallthru
      _
    // Predicated region
    $region30: #{net_forward.1} parent=1 // pred_check
      _
    $region31: #{net_forward.1} parent=1 // pred_check_branch
      %70 = sbr.rel (0) target = $region33
    $region32: #{net_forward.1} parent=1 // pred_region
      %71 = dma.done [#allocation7], 32
    $region33: #{net_forward.1} parent=1 // pred_fallthru
      _
    // Predicated region
    $region34: #{net_forward.1} parent=1 // pred_check
      _
    $region35: #{net_forward.1} parent=1 // pred_check_branch
      %73 = sbr.rel (0) target = $region37
    $region36: #{net_forward.1} parent=1 // pred_region
      %74 = dma.done [#allocation10], 128
    $region37: #{net_forward.1} parent=1 // pred_fallthru
      _
    %v75 = vld [vmem:[#allocation9] sm:$0xff]
    %v76 = vld [vmem:[#allocation3] sm:$0xff]
    %v77 = vld [vmem:[#allocation3 + $0x8] sm:$0xff]
    %v78 = vld [vmem:[#allocation3 + $0x10] sm:$0xff]
    %v79 = vld [vmem:[#allocation3 + $0x18] sm:$0xff]
    %v80 = vld [vmem:[#allocation3 + $0x20] sm:$0xff]
    %v81 = vld [vmem:[#allocation3 + $0x28] sm:$0xff]
    %v82 = vld [vmem:[#allocation3 + $0x30] sm:$0xff]
    %v83 = vld [vmem:[#allocation3 + $0x38] sm:$0xff]
    %v84 = vld [vmem:[#allocation3 + $0x40] sm:$0xff]
    %v85 = vld [vmem:[#allocation3 + $0x48] sm:$0xff]
    %v86 = vld [vmem:[#allocation3 + $0x50] sm:$0xff]
    %v87 = vld [vmem:[#allocation3 + $0x58] sm:$0xff]
    %vm88 = vcmask 785408
    %v90 = vsel %vm88, %v75, 0
    %92 = vmatprep.subr.mxu0 0.0
    %93 = vmatpush1.msra.mxu0 %v76
    %94 = vmatprep.subr.mxu0 0.0
    %95 = vmatpush1.msra.mxu0 %v77
    %96 = vmatprep.subr.mxu0 0.0
    %97 = vmatpush1.msra.mxu0 %v78
    %98 = vmatprep.subr.mxu0 0.0
    %99 = vmatpush1.msra.mxu0 %v79
    %100 = vmatprep.subr.mxu0 0.0
    %101 = vmatpush1.msra.mxu0 %v80
    %102 = vmatprep.subr.mxu0 0.0
    %103 = vmatpush1.msra.mxu0 %v81
    %104 = vmatprep.subr.mxu0 0.0
    %105 = vmatpush1.msra.mxu0 %v82
    %106 = vmatprep.subr.mxu0 0.0
    %107 = vmatpush1.msra.mxu0 %v83
    %108 = vmatprep.subr.mxu0 0.0
    %109 = vmatpush1.msra.mxu0 %v84
    %110 = vmatprep.subr.mxu0 0.0
    %111 = vmatpush1.msra.mxu0 %v85
    %112 = vmatprep.subr.mxu0 0.0
    %113 = vmatpush1.msra.mxu0 %v86
    %114 = vmatprep.subr.mxu0 0.0
    %115 = vmatpush1.msra.mxu0 %v87
    %116 = vmatprep.subr.mxu0 0.0
    %117 = vmatpush1.msra.mxu0 0.0
    %118 = vmatprep.subr.mxu0 0.0
    %119 = vmatpush1.msra.mxu0 0.0
    %120 = vmatprep.subr.mxu0 0.0
    %121 = vmatpush1.msra.mxu0 0.0
    %122 = vmatprep.subr.mxu0 0.0
    %123 = vmatpush1.msra.mxu0 0.0
    %124 = vmatprep.subr.mxu0 0.0
    %125 = vmatpush1.msra.mxu0 0.0
    %126 = vmatprep.subr.mxu0 0.0
    %127 = vmatpush1.msra.mxu0 0.0
    %128 = vmatprep.subr.mxu0 0.0
    %129 = vmatpush1.msra.mxu0 0.0
    %130 = vmatprep.subr.mxu0 0.0
    %131 = vmatpush1.msra.mxu0 0.0
    %132 = vmatprep.subr.mxu0 0.0
    %133 = vmatpush1.msra.mxu0 0.0
    %134 = vmatprep.subr.mxu0 0.0
    %135 = vmatpush1.msra.mxu0 0.0
    %136 = vmatprep.subr.mxu0 0.0
    %137 = vmatpush1.msra.mxu0 0.0
    %138 = vmatprep.subr.mxu0 0.0
    %139 = vmatpush1.msra.mxu0 0.0
    %140 = vmatprep.subr.mxu0 0.0
    %141 = vmatpush1.msra.mxu0 0.0
    %142 = vmatprep.subr.mxu0 0.0
    %143 = vmatpush1.msra.mxu0 0.0
    %144 = vmatprep.subr.mxu0 0.0
    %145 = vmatpush1.msra.mxu0 0.0
    %146 = vmatprep.subr.mxu0 0.0
    %147 = vmatpush1.msra.mxu0 0.0
    %148 = vmatprep.subr.mxu0 0.0
    %149 = vmatpush1.msra.mxu0 0.0
    %150 = vmatprep.subr.mxu0 0.0
    %151 = vmatpush1.msra.mxu0 0.0
    %152 = vmatprep.subr.mxu0 0.0
    %153 = vmatpush1.msra.mxu0 0.0
    %154 = vmatprep.subr.mxu0 0.0
    %155 = vmatpush1.msra.mxu0 0.0
    %156 = vmatprep.mubr.f32.mxu0 0.0
    %157 = vmatmul.mubr.f32.gmra.mrb[0].mxu0 %v90
    %v158 = vpop.f32.mrb[0].mxu0
    %v159 = vadd.f32 0.0, %v158
    %v160 = vpop.f32.mrb[0].mxu0
    %161 = vdwg.mxu0
    %163 = vrot.lane.b32.xlu0 %v159, 122
    %v164 = vpop.permute.xlu0 %163
    %166 = vrot.lane.b32.xlu0 %v159, 90
    %v167 = vpop.permute.xlu0 %166
    %vm169 = vcmask 736256
    %v170 = vsel %vm169, %v164, %v167
    %v171 = vld [vmem:[#allocation8] sm:$0x1]
    %v172 = vlaneseq
    %v173 = vshrl.u32 %v172, 7
    %v174 = vsub.s32 0, %v173
    %v175 = vrot.slane %v171, %v174
    %v176 = vadd.f32 %v170, %v175
    %v177 = vmax.f32 %v159, %v176
    %179 = vrot.lane.b32.xlu0 %v177, 127
    %v180 = vpop.permute.xlu0 %179
    %182 = vrot.lane.b32.xlu0 %v177, 95
    %v183 = vpop.permute.xlu0 %182
    %vm185 = vcmask 777216
    %v186 = vsel %vm185, %v180, %v183
    %v187 = vld [vmem:[#allocation8 + $0x1] sm:$0x1]
    %v188 = vlaneseq
    %v189 = vshrl.u32 %v188, 7
    %v190 = vsub.s32 0, %v189
    %v191 = vrot.slane %v187, %v190
    %v192 = vadd.f32 %v186, %v191
    %v193 = vmax.f32 %v177, %v192
    %v194 = vld [vmem:[#allocation6] sm:$0xff]
    %v195 = vld [vmem:[#allocation6 + $0x8] sm:$0xff]
    %v196 = vld [vmem:[#allocation6 + $0x10] sm:$0xff]
    %v197 = vld [vmem:[#allocation6 + $0x18] sm:$0xff]
    %v198 = vld [vmem:[#allocation6 + $0x20] sm:$0xff]
    %v199 = vld [vmem:[#allocation6 + $0x28] sm:$0xff]
    %v200 = vld [vmem:[#allocation6 + $0x30] sm:$0xff]
    %v201 = vld [vmem:[#allocation6 + $0x38] sm:$0xff]
    %v202 = vld [vmem:[#allocation6 + $0x40] sm:$0xff]
    %v203 = vld [vmem:[#allocation6 + $0x48] sm:$0xff]
    %v204 = vld [vmem:[#allocation6 + $0x50] sm:$0xff]
    %v205 = vld [vmem:[#allocation6 + $0x58] sm:$0xff]
    %s206 = sld [smem:[#allocation2]]
    %v207 = vstv %s206
    %v209 = vsel %vm88, %v193, 0
    %211 = vmatprep.subr.mxu0 0.0
    %212 = vmatpush1.msra.mxu0 %v194
    %213 = vmatprep.subr.mxu0 0.0
    %214 = vmatpush1.msra.mxu0 %v195
    %215 = vmatprep.subr.mxu0 0.0
    %216 = vmatpush1.msra.mxu0 %v196
    %217 = vmatprep.subr.mxu0 0.0
    %218 = vmatpush1.msra.mxu0 %v197
    %219 = vmatprep.subr.mxu0 0.0
    %220 = vmatpush1.msra.mxu0 %v198
    %221 = vmatprep.subr.mxu0 0.0
    %222 = vmatpush1.msra.mxu0 %v199
    %223 = vmatprep.subr.mxu0 0.0
    %224 = vmatpush1.msra.mxu0 %v200
    %225 = vmatprep.subr.mxu0 0.0
    %226 = vmatpush1.msra.mxu0 %v201
    %227 = vmatprep.subr.mxu0 0.0
    %228 = vmatpush1.msra.mxu0 %v202
    %229 = vmatprep.subr.mxu0 0.0
    %230 = vmatpush1.msra.mxu0 %v203
    %231 = vmatprep.subr.mxu0 0.0
    %232 = vmatpush1.msra.mxu0 %v204
    %233 = vmatprep.subr.mxu0 0.0
    %234 = vmatpush1.msra.mxu0 %v205
    %235 = vmatprep.subr.mxu0 0.0
    %236 = vmatpush1.msra.mxu0 0.0
    %237 = vmatprep.subr.mxu0 0.0
    %238 = vmatpush1.msra.mxu0 0.0
    %239 = vmatprep.subr.mxu0 0.0
    %240 = vmatpush1.msra.mxu0 0.0
    %241 = vmatprep.subr.mxu0 0.0
    %242 = vmatpush1.msra.mxu0 0.0
    %243 = vmatprep.subr.mxu0 0.0
    %244 = vmatpush1.msra.mxu0 0.0
    %245 = vmatprep.subr.mxu0 0.0
    %246 = vmatpush1.msra.mxu0 0.0
    %247 = vmatprep.subr.mxu0 0.0
    %248 = vmatpush1.msra.mxu0 0.0
    %249 = vmatprep.subr.mxu0 0.0
    %250 = vmatpush1.msra.mxu0 0.0
    %251 = vmatprep.subr.mxu0 0.0
    %252 = vmatpush1.msra.mxu0 0.0
    %253 = vmatprep.subr.mxu0 0.0
    %254 = vmatpush1.msra.mxu0 0.0
    %255 = vmatprep.subr.mxu0 0.0
    %256 = vmatpush1.msra.mxu0 0.0
    %257 = vmatprep.subr.mxu0 0.0
    %258 = vmatpush1.msra.mxu0 0.0
    %259 = vmatprep.subr.mxu0 0.0
    %260 = vmatpush1.msra.mxu0 0.0
    %261 = vmatprep.subr.mxu0 0.0
    %262 = vmatpush1.msra.mxu0 0.0
    %263 = vmatprep.subr.mxu0 0.0
    %264 = vmatpush1.msra.mxu0 0.0
    %265 = vmatprep.subr.mxu0 0.0
    %266 = vmatpush1.msra.mxu0 0.0
    %267 = vmatprep.subr.mxu0 0.0
    %268 = vmatpush1.msra.mxu0 0.0
    %269 = vmatprep.subr.mxu0 0.0
    %270 = vmatpush1.msra.mxu0 0.0
    %271 = vmatprep.subr.mxu0 0.0
    %272 = vmatpush1.msra.mxu0 0.0
    %273 = vmatprep.subr.mxu0 0.0
    %274 = vmatpush1.msra.mxu0 0.0
    %275 = vmatprep.mubr.f32.mxu0 0.0
    %276 = vmatmul.mubr.f32.gmra.mrb[0].mxu0 %v209
    %v277 = vpop.f32.mrb[0].mxu0
    %v278 = vadd.f32 %v207, %v277
    %v279 = vpop.f32.mrb[0].mxu0
    %280 = vdwg.mxu0
    %v281 = vmax.f32 %v278, 0.0
    %vm282 = vcmask 56320
    %283 = vst.msk [vmem:[#allocation11] sm:$0xff] %vm282, %v281
    // Predicated region
    $region38: #{net_forward.1} parent=1 // pred_check
      _
    $region39: #{net_forward.1} parent=1 // pred_check_branch
      %285 = sbr.rel (0) target = $region41
    $region40: #{net_forward.1} parent=1 // pred_region
      %s287 = ssub.s32 128, 32
      %288 = vsyncadd [#allocation5], %s287
      %s289 = sshll.u32 [#allocation11], 4
      %s290 = int_to_ptr.vmem [resolvable:$true] %s289
      %295 = dma.vmem_to_hbm [thread:$0]  %s290, 32, %s5, [#allocation5], 32, 32, 2
    $region41: #{net_forward.1} parent=1 // pred_fallthru
      _
    // Predicated region
    $region42: #{net_forward.1} parent=1 // pred_check
      _
    $region43: #{net_forward.1} parent=1 // pred_check_branch
      %297 = sbr.rel (0) target = $region45
    $region44: #{net_forward.1} parent=1 // pred_region
      %298 = dma.done [#allocation5], 128
    $region45: #{net_forward.1} parent=1 // pred_fallthru
      _
    %299 = vsyncpa [#allocation4], 1
    %300 = vsyncpa [#allocation7], 1
    %301 = vsyncpa [#allocation10], 1
    %302 = vsyncpa [#allocation5], 1

</llo_original>
